<compile_context>
chip_gen: v7x
topology: tpu7x:2x2x1
jax: 0.10.0
libtpu: 0.0.40
codegen_flags: <defaults>
</compile_context>

<pallas_src>
import functools

import jax
import jax.numpy as jnp
from jax.experimental import pallas as pl
from jax.experimental.pallas import tpu as pltpu


def bigram_kernel(idx_ref, table_ref, logits_ref, lse_ref, *, vocab_size):
    # idx_ref    : (R, 1)   int32  token ids for this row block
    # table_ref  : (Vr, Vp) f32    zero-padded embedding table (VMEM-resident,
    #                              same block every grid step -> fetched once)
    # logits_ref : (R, Vp)  f32    gathered logits rows (lane-dense store)
    # lse_ref    : (R, 1)   f32    per-row log-sum-exp over the real vocab
    r, vp = logits_ref.shape
    vr = table_ref.shape[0]

    # Embedding gather as a one-hot matmul on the (otherwise idle) MXU:
    # (R, Vr) @ (Vr, Vp). Exact: each output row is 1.0*table[idx] + 0*rest.
    ids = idx_ref[...]                                            # (R, 1)
    row_iota = jax.lax.broadcasted_iota(jnp.int32, (r, vr), 1)
    onehot = (row_iota == ids).astype(jnp.float32)                # (R, Vr)
    logits = jnp.dot(onehot, table_ref[...],
                     preferred_element_type=jnp.float32)          # (R, Vp)
    logits_ref[...] = logits

    # Numerically stable log-sum-exp; padded vocab columns masked out of the
    # normalizer so they contribute exactly zero.
    col = jax.lax.broadcasted_iota(jnp.int32, (r, vp), 1)
    masked = jnp.where(col < vocab_size, logits, jnp.float32(-1e30))
    m = jnp.max(masked, axis=-1, keepdims=True)                   # (R, 1)
    s = jnp.sum(jnp.exp(masked - m), axis=-1, keepdims=True)      # (R, 1)
    lse_ref[...] = jnp.log(s) + m


def bigram_forward(index, targets, table, *, row_block=None):
    """Same semantics as BigramLanguageModel.forward.

    targets is not None -> (logits of shape (B*T, V), scalar mean CE loss)
    targets is None     -> (logits of shape (B, T, V), None)
    """
    B, T = index.shape
    V, C = table.shape            # bigram model: C == V
    N = B * T

    Vp = pl.cdiv(C, 128) * 128    # lane-dense logits / embedding dim
    Vr = pl.cdiv(V, 128) * 128    # lane-dense one-hot / MXU contraction dim

    # Row-block size: large enough to amortize per-step grid overhead and fill
    # (8,128) tiles; a lane-multiple once N is non-trivial (unmasked stores on
    # the slim lse stream too), otherwise one sublane-aligned block.
    if row_block is not None:
        R = row_block
    elif N >= 2048:
        R = 512
    elif N >= 256:
        R = 128
    else:
        R = pl.cdiv(N, 8) * 8
    Np = pl.cdiv(N, R) * R
    num_blocks = Np // R

    idx = jnp.pad(index.reshape(N).astype(jnp.int32), (0, Np - N)).reshape(Np, 1)
    table_p = jnp.pad(table.astype(jnp.float32), ((0, Vr - V), (0, Vp - C)))

    kernel = functools.partial(bigram_kernel, vocab_size=C)

    cost = pl.CostEstimate(
        flops=2 * Np * Vr * Vp + 8 * Np * Vp,     # one-hot gather matmul + LSE math
        transcendentals=Np * Vp,                  # exp (EUP)
        bytes_accessed=Vr * Vp * 4                # resident table (read once)
        + Np * 4                                  # token ids
        + Np * Vp * 4                             # logits writeback
        + Np * 4,                                 # per-row LSE
    )

    logits_p, lse = pl.pallas_call(
        kernel,
        out_shape=(
            jax.ShapeDtypeStruct((Np, Vp), jnp.float32),
            jax.ShapeDtypeStruct((Np, 1), jnp.float32),
        ),
        grid_spec=pltpu.PrefetchScalarGridSpec(
            num_scalar_prefetch=0,
            grid=(num_blocks,),
            in_specs=[
                pl.BlockSpec((R, 1), lambda i: (i, 0)),
                pl.BlockSpec((Vr, Vp), lambda i: (0, 0)),   # whole table, resident
            ],
            out_specs=[
                pl.BlockSpec((R, Vp), lambda i: (i, 0)),
                pl.BlockSpec((R, 1), lambda i: (i, 0)),
            ],
        ),
        compiler_params=pltpu.CompilerParams(
            dimension_semantics=("parallel",)),
        cost_estimate=cost,
    )(idx, table_p)

    logits = logits_p[:N, :C]
    if targets is None:
        return logits.reshape(B, T, C), None

    # Target-logit pick + mean are trivial XLA ops on data we already emit.
    tgt = targets.reshape(N).astype(jnp.int32)
    tgt_logit = jnp.take_along_axis(logits, tgt[:, None], axis=1)[:, 0]
    loss = jnp.mean(lse[:N, 0] - tgt_logit)
    return logits, loss


if __name__ == "__main__":
    key = jax.random.PRNGKey(0)
    k_tbl, k_idx, k_tgt = jax.random.split(key, 3)

    vocab_size = 32   # synthetic vocab (len(uniqueChars))
    B, T = 2, 8
    N = B * T

    # nn.Embedding default init: N(0, 1)
    table = jax.random.normal(k_tbl, (vocab_size, vocab_size), dtype=jnp.float32)
    index = jax.random.randint(k_idx, (B, T), 0, vocab_size, dtype=jnp.int32)
    targets = jax.random.randint(k_tgt, (B, T), 0, vocab_size, dtype=jnp.int32)

    logits, loss = bigram_forward(index, targets, table)
    jax.block_until_ready((logits, loss))

    # Reference check against plain JAX (embedding gather + cross-entropy).
    ref_logits = table[index.reshape(-1)]
    ref_lse = jax.scipy.special.logsumexp(ref_logits, axis=-1)
    ref_loss = jnp.mean(ref_lse - ref_logits[jnp.arange(N), targets.reshape(-1)])
    assert logits.shape == (N, vocab_size)
    assert jnp.allclose(logits, ref_logits, atol=1e-5)
    assert jnp.allclose(loss, ref_loss, atol=1e-5)

    # Inference path (targets=None) returns (B, T, V) logits and no loss.
    logits3d, no_loss = bigram_forward(index, None, table)
    jax.block_until_ready(logits3d)
    assert logits3d.shape == (B, T, vocab_size)
    assert no_loss is None
    assert jnp.allclose(logits3d.reshape(N, vocab_size), ref_logits, atol=1e-5)

    print("KERNEL_OK")
</pallas_src>

<mosaic_0001>
module attributes {stable_mosaic.version = 11 : i64} {
  func.func @bigram_kernel(%arg0: i32, %arg1: memref<16x1xi32, #tpu.memory_space<vmem>>, %arg2: memref<128x128xf32, #tpu.memory_space<vmem>>, %arg3: memref<16x128xf32, #tpu.memory_space<vmem>>, %arg4: memref<16x1xf32, #tpu.memory_space<vmem>>) attributes {dimension_semantics = [#tpu.dimension_semantics<parallel>], iteration_bounds = array<i64: 1>, scalar_prefetch = 0 : i64, scratch_operands = 0 : i64, tpu.core_type = #tpu.core_type<tc>, window_params = [{transform_indices = @transform_0, window_bounds = array<i64: 16, 1>}, {pipeline_mode = #tpu.pipeline_mode<synchronous>, transform_indices = @transform_1, window_bounds = array<i64: 128, 128>}, {transform_indices = @transform_2, window_bounds = array<i64: 16, 128>}, {transform_indices = @transform_3, window_bounds = array<i64: 16, 1>}]} {
    %c0 = arith.constant 0 : index
    %c0_0 = arith.constant 0 : index
    %0 = vector.load %arg1[%c0, %c0_0] : memref<16x1xi32, #tpu.memory_space<vmem>>, vector<16x1xi32>
    %1 = tpu.iota {dimensions = array<i32: 1>} : vector<16x128xi32>
    %2 = vector.broadcast %0 : vector<16x1xi32> to vector<16x128xi32>
    %3 = arith.cmpi eq, %1, %2 : vector<16x128xi32>
    %4 = arith.extui %3 : vector<16x128xi1> to vector<16x128xi32>
    %5 = arith.sitofp %4 : vector<16x128xi32> to vector<16x128xf32>
    %c0_1 = arith.constant 0 : index
    %c0_2 = arith.constant 0 : index
    %6 = vector.load %arg2[%c0_1, %c0_2] : memref<128x128xf32, #tpu.memory_space<vmem>>, vector<128x128xf32>
    %cst = arith.constant dense<0.000000e+00> : vector<16x128xf32>
    %7 = tpu.matmul %5, %6, %cst {dimension_numbers = #tpu.dot_dimension_numbers<[1], [0], [0], [1], [0, 0, 1, 1], [], []>} : vector<16x128xf32>, vector<128x128xf32>, vector<16x128xf32> -> vector<16x128xf32>
    %c0_3 = arith.constant 0 : index
    %c0_4 = arith.constant 0 : index
    %8 = vector.load %arg3[%c0_3, %c0_4] : memref<16x128xf32, #tpu.memory_space<vmem>>, vector<16x128xf32>
    tpu.vector_store %arg3[%c0_3, %c0_4], %7 {strides = array<i32>} : memref<16x128xf32, #tpu.memory_space<vmem>>, vector<16x128xf32>,
    %9 = tpu.iota {dimensions = array<i32: 1>} : vector<16x128xi32>
    %c32_i32 = arith.constant 32 : i32
    %10 = vector.broadcast %c32_i32 : i32 to vector<16x128xi32>
    %11 = arith.cmpi slt, %9, %10 : vector<16x128xi32>
    %cst_5 = arith.constant -1.000000e+30 : f32
    %12 = vector.broadcast %cst_5 : f32 to vector<16x128xf32>
    %13 = arith.select %11, %7, %12 : vector<16x128xi1>, vector<16x128xf32>
    %cst_6 = arith.constant dense<0xFF800000> : vector<16xf32>
    %14 = vector.multi_reduction <maximumf>, %13, %cst_6 [1] : vector<16x128xf32> to vector<16xf32>
    %15 = vector.shape_cast %14 : vector<16xf32> to vector<16x1xf32>
    %16 = vector.broadcast %15 : vector<16x1xf32> to vector<16x128xf32>
    %17 = arith.subf %13, %16 : vector<16x128xf32>
    %18 = math.exp %17 : vector<16x128xf32>
    %cst_7 = arith.constant dense<0.000000e+00> : vector<16xf32>
    %19 = vector.multi_reduction <add>, %18, %cst_7 [1] : vector<16x128xf32> to vector<16xf32>
    %20 = vector.shape_cast %19 : vector<16xf32> to vector<16x1xf32>
    %21 = math.log %20 : vector<16x1xf32>
    %22 = arith.addf %21, %15 : vector<16x1xf32>
    %c0_8 = arith.constant 0 : index
    %c0_9 = arith.constant 0 : index
    %23 = vector.load %arg4[%c0_8, %c0_9] : memref<16x1xf32, #tpu.memory_space<vmem>>, vector<16x1xf32>
    tpu.vector_store %arg4[%c0_8, %c0_9], %22 {strides = array<i32>} : memref<16x1xf32, #tpu.memory_space<vmem>>, vector<16x1xf32>,
    return
  }
  func.func @transform_0(%arg0: i32) -> (i32, i32) {
    %c0_i32 = arith.constant 0 : i32
    %c0_i32_0 = arith.constant 0 : i32
    return %arg0, %c0_i32 : i32, i32
  }
  func.func @transform_1(%arg0: i32) -> (i32, i32) {
    %c0_i32 = arith.constant 0 : i32
    %c0_i32_0 = arith.constant 0 : i32
    %c0_i32_1 = arith.constant 0 : i32
    return %c0_i32, %c0_i32_0 : i32, i32
  }
  func.func @transform_2(%arg0: i32) -> (i32, i32) {
    %c0_i32 = arith.constant 0 : i32
    %c0_i32_0 = arith.constant 0 : i32
    return %arg0, %c0_i32 : i32, i32
  }
  func.func @transform_3(%arg0: i32) -> (i32, i32) {
    %c0_i32 = arith.constant 0 : i32
    %c0_i32_0 = arith.constant 0 : i32
    return %arg0, %c0_i32 : i32, i32
  }
}

</mosaic_0001>

<llo_original>
// kernel: tpu_custom_call.1
$region0: #{tpu_custom_call.1}
  #allocation0 [shape = 'u32[]', space=smem, size = 0x4, offset = 0x4, fixed_abs, tag = 'smem constant byte address 0x4 - core index']
  #allocation1 [shape = 'u32[144,128]{1,0:T(1,128)}', space=vmem, size = 0x12000, scoped, tag = 'internal scratch']
  %s0 = inlined_call_operand.vmem [shape: s32[16,1], index: 0, kind: input, shape index: {}]
  %s1 = inlined_call_operand.hbm [shape: f32[128,128], index: 1, kind: input, shape index: {}]
  %s2 = inlined_call_operand.hbm [shape: f32[16,128], index: 2, kind: output, shape index: {0}]
  %s3 = inlined_call_operand.vmem [shape: f32[16,1], index: 3, kind: output, shape index: {1}]
  %4 = xla_tuple %s2, %s3
  %s5 = sld [smem:[#allocation0]]
  $region30: #{tpu_custom_call.1} parent=0
    _
  %s7 = ssub.s32 1, %s5
  %s8 = scalar_select 0, %s7, %s5
  $region1: #{tpu_custom_call.1} parent=0
    #allocation2 [shape = 'u8[65536]{0}', space=vmem, size = 0x10000, scoped, tag = 'input window, operand 1, single buffered']
    #allocation3 [shape = 's32[1]{0}', space=sflag, size = 0x4, scoped, tag = 'scoped memory for tpu_custom_call.1']
    #allocation4 [shape = 's32[1]{0}', space=sflag, size = 0x4, scoped, tag = 'scoped memory for tpu_custom_call.1']
    #allocation5 [shape = 'u8[8192]{0}', space=vmem, size = 0x2000, scoped, tag = 'output window, operand 0, single buffered']
    %9 = vsyncpa [#allocation3], 0
    %10 = vsyncpa [#allocation4], 0
    // Predicated region
    $region2: #{tpu_custom_call.1} parent=1 // pred_check
      _
    $region3: #{tpu_custom_call.1} parent=1 // pred_check_branch
      %12 = sbr.rel (0) target = $region5
    $region4: #{tpu_custom_call.1} parent=1 // pred_region
      _
    $region5: #{tpu_custom_call.1} parent=1 // pred_fallthru
      _
    // Predicated region
    $region6: #{tpu_custom_call.1} parent=1 // pred_check
      _
    $region7: #{tpu_custom_call.1} parent=1 // pred_check_branch
      %14 = sbr.rel (0) target = $region9
    $region8: #{tpu_custom_call.1} parent=1 // pred_region
      %s16 = ssub.s32 2048, 2048
      %17 = vsyncadd [#allocation3], %s16
      %s18 = sshll.u32 [#allocation2], 4
      %s19 = int_to_ptr.vmem [resolvable:$true] %s18
      %24 = dma.hbm_to_vmem [thread:$0]  %s1, 2048, %s19, [#allocation3], 128, 128, 8
    $region9: #{tpu_custom_call.1} parent=1 // pred_fallthru
      _
    // Predicated region
    $region10: #{tpu_custom_call.1} parent=1 // pred_check
      _
    $region11: #{tpu_custom_call.1} parent=1 // pred_check_branch
      %26 = sbr.rel (0) target = $region13
    $region12: #{tpu_custom_call.1} parent=1 // pred_region
      %27 = dma.done [#allocation3], 2048
    $region13: #{tpu_custom_call.1} parent=1 // pred_fallthru
      _
    %v28 = vld [vmem:[%s0] sm:$0xff]
    %v29 = vld [vmem:[%s0 + $0x8] sm:$0xff]
    %v30 = vlaneseq
    %v31 = vand.u32 %v30, 127
    %32 = vset.pattern.permute.xlu0 0
    %33 = vperm.xlu0 %32, %v28
    %v34 = vpop.permute.xlu0 %33
    %35 = vset.pattern.permute.xlu0 0
    %36 = vperm.xlu0 %35, %v29
    %v37 = vpop.permute.xlu0 %36
    %vm38 = vcmp.eq.s32.totalorder %v31, %v34
    %vm39 = vcmp.eq.s32.totalorder %v31, %v37
    %v40 = vsel %vm38, 1, 0
    %v41 = vsel %vm39, 1, 0
    %v42 = vcvt.s32.f32 %v40
    %v43 = vcvt.s32.f32 %v41
    %v44 = vld [vmem:[#allocation2] sm:$0xff]
    %v45 = vld [vmem:[#allocation2 + $0x8] sm:$0xff]
    %v46 = vld [vmem:[#allocation2 + $0x10] sm:$0xff]
    %v47 = vld [vmem:[#allocation2 + $0x18] sm:$0xff]
    %v48 = vld [vmem:[#allocation2 + $0x20] sm:$0xff]
    %v49 = vld [vmem:[#allocation2 + $0x28] sm:$0xff]
    %v50 = vld [vmem:[#allocation2 + $0x30] sm:$0xff]
    %v51 = vld [vmem:[#allocation2 + $0x38] sm:$0xff]
    %v52 = vld [vmem:[#allocation2 + $0x40] sm:$0xff]
    %v53 = vld [vmem:[#allocation2 + $0x48] sm:$0xff]
    %v54 = vld [vmem:[#allocation2 + $0x50] sm:$0xff]
    %v55 = vld [vmem:[#allocation2 + $0x58] sm:$0xff]
    %v56 = vld [vmem:[#allocation2 + $0x60] sm:$0xff]
    %v57 = vld [vmem:[#allocation2 + $0x68] sm:$0xff]
    %v58 = vld [vmem:[#allocation2 + $0x70] sm:$0xff]
    %v59 = vld [vmem:[#allocation2 + $0x78] sm:$0xff]
    %60 = vmatprep.subr.mxu0 0.0
    %61 = vmatpush1.msra.mxu0 %v44
    %62 = vmatprep.subr.mxu0 0.0
    %63 = vmatpush1.msra.mxu0 %v45
    %64 = vmatprep.subr.mxu0 0.0
    %65 = vmatpush1.msra.mxu0 %v46
    %66 = vmatprep.subr.mxu0 0.0
    %67 = vmatpush1.msra.mxu0 %v47
    %68 = vmatprep.subr.mxu0 0.0
    %69 = vmatpush1.msra.mxu0 %v48
    %70 = vmatprep.subr.mxu0 0.0
    %71 = vmatpush1.msra.mxu0 %v49
    %72 = vmatprep.subr.mxu0 0.0
    %73 = vmatpush1.msra.mxu0 %v50
    %74 = vmatprep.subr.mxu0 0.0
    %75 = vmatpush1.msra.mxu0 %v51
    %76 = vmatprep.subr.mxu0 0.0
    %77 = vmatpush1.msra.mxu0 %v52
    %78 = vmatprep.subr.mxu0 0.0
    %79 = vmatpush1.msra.mxu0 %v53
    %80 = vmatprep.subr.mxu0 0.0
    %81 = vmatpush1.msra.mxu0 %v54
    %82 = vmatprep.subr.mxu0 0.0
    %83 = vmatpush1.msra.mxu0 %v55
    %84 = vmatprep.subr.mxu0 0.0
    %85 = vmatpush1.msra.mxu0 %v56
    %86 = vmatprep.subr.mxu0 0.0
    %87 = vmatpush1.msra.mxu0 %v57
    %88 = vmatprep.subr.mxu0 0.0
    %89 = vmatpush1.msra.mxu0 %v58
    %90 = vmatprep.subr.mxu0 0.0
    %91 = vmatpush1.msra.mxu0 %v59
    %92 = vmatprep.subr.mxu0 0.0
    %93 = vmatpush1.msra.mxu0 0.0
    %94 = vmatprep.subr.mxu0 0.0
    %95 = vmatpush1.msra.mxu0 0.0
    %96 = vmatprep.subr.mxu0 0.0
    %97 = vmatpush1.msra.mxu0 0.0
    %98 = vmatprep.subr.mxu0 0.0
    %99 = vmatpush1.msra.mxu0 0.0
    %100 = vmatprep.subr.mxu0 0.0
    %101 = vmatpush1.msra.mxu0 0.0
    %102 = vmatprep.subr.mxu0 0.0
    %103 = vmatpush1.msra.mxu0 0.0
    %104 = vmatprep.subr.mxu0 0.0
    %105 = vmatpush1.msra.mxu0 0.0
    %106 = vmatprep.subr.mxu0 0.0
    %107 = vmatpush1.msra.mxu0 0.0
    %108 = vmatprep.subr.mxu0 0.0
    %109 = vmatpush1.msra.mxu0 0.0
    %110 = vmatprep.subr.mxu0 0.0
    %111 = vmatpush1.msra.mxu0 0.0
    %112 = vmatprep.subr.mxu0 0.0
    %113 = vmatpush1.msra.mxu0 0.0
    %114 = vmatprep.subr.mxu0 0.0
    %115 = vmatpush1.msra.mxu0 0.0
    %116 = vmatprep.subr.mxu0 0.0
    %117 = vmatpush1.msra.mxu0 0.0
    %118 = vmatprep.subr.mxu0 0.0
    %119 = vmatpush1.msra.mxu0 0.0
    %120 = vmatprep.subr.mxu0 0.0
    %121 = vmatpush1.msra.mxu0 0.0
    %122 = vmatprep.subr.mxu0 0.0
    %123 = vmatpush1.msra.mxu0 0.0
    %124 = vmatprep.mubr.f32.mxu0 0.0
    %125 = vmatmul.mubr.f32.gmra.mrb[0].mxu0 %v42
    %v126 = vpop.f32.mrb[0].mxu0
    %v127 = vadd.f32 0.0, %v126
    %v128 = vpop.f32.mrb[0].mxu0
    %129 = vmatprep.mubr.f32.mxu0 0.0
    %130 = vmatmul.mubr.f32.gmra.mrb[0].mxu0 %v43
    %v131 = vpop.f32.mrb[0].mxu0
    %v132 = vadd.f32 0.0, %v131
    %v133 = vpop.f32.mrb[0].mxu0
    %134 = vdwg.mxu0
    %135 = vst [vmem:[#allocation5] sm:$0xff] %v127
    %136 = vst [vmem:[#allocation5 + $0x8] sm:$0xff] %v132
    %vm137 = vcmp.lt.s32.totalorder %v31, 32
    %v138 = vsel %vm137, %v127, -1e+30
    %v139 = vsel %vm137, %v132, -1e+30
    %140 = vmax.xlane.f32.xlu0 %v138
    %v141 = vpop.xlane.xlu0 %140
    %142 = vmax.xlane.f32.xlu0 %v139
    %v143 = vpop.xlane.xlu0 %142
    %v144 = vsub.f32 %v138, %v141
    %v145 = vsub.f32 %v139, %v143
    %v146 = vmul.f32 %v144, 1.442695
    %v147 = vpow.pop %v146
    %v148 = vmul.f32 %v145, 1.442695
    %v149 = vpow.pop %v148
    %150 = vadd.xlane.f32.xlu0 %v147
    %v151 = vpop.xlane.xlu0 %150
    %152 = vadd.xlane.f32.xlu0 %v149
    %v153 = vpop.xlane.xlu0 %152
    %v154 = vlog2.pop %v151
    %v155 = vmul.f32 %v154, 0.6931472
    %v156 = vlog2.pop %v153
    %v157 = vmul.f32 %v156, 0.6931472
    %v158 = vadd.f32 %v155, %v141
    %v159 = vadd.f32 %v157, %v143
    %vm160 = vcmask 7168
    %161 = vst.msk [vmem:[%s3] sm:$0xff] %vm160, %v158
    %162 = vst.msk [vmem:[%s3 + $0x8] sm:$0xff] %vm160, %v159
    // Predicated region
    $region14: #{tpu_custom_call.1} parent=1 // pred_check
      _
    $region15: #{tpu_custom_call.1} parent=1 // pred_check_branch
      %164 = sbr.rel (0) target = $region17
    $region16: #{tpu_custom_call.1} parent=1 // pred_region
      %s166 = ssub.s32 256, 256
      %167 = vsyncadd [#allocation4], %s166
      %s168 = sshll.u32 [#allocation5], 4
      %s169 = int_to_ptr.vmem [resolvable:$true] %s168
      %174 = dma.vmem_to_hbm [thread:$0]  %s169, 256, %s2, [#allocation4], 128, 128, 8
    $region17: #{tpu_custom_call.1} parent=1 // pred_fallthru
      _
    // Predicated region
    $region18: #{tpu_custom_call.1} parent=1 // pred_check
      _
    $region19: #{tpu_custom_call.1} parent=1 // pred_check_branch
      %176 = sbr.rel (0) target = $region21
    $region20: #{tpu_custom_call.1} parent=1 // pred_region
      _
    $region21: #{tpu_custom_call.1} parent=1 // pred_fallthru
      _
    // Predicated region
    $region22: #{tpu_custom_call.1} parent=1 // pred_check
      _
    $region23: #{tpu_custom_call.1} parent=1 // pred_check_branch
      %178 = sbr.rel (0) target = $region25
    $region24: #{tpu_custom_call.1} parent=1 // pred_region
      %179 = dma.done [#allocation4], 256
    $region25: #{tpu_custom_call.1} parent=1 // pred_fallthru
      _
    // Predicated region
    $region26: #{tpu_custom_call.1} parent=1 // pred_check
      _
    $region27: #{tpu_custom_call.1} parent=1 // pred_check_branch
      %181 = sbr.rel (0) target = $region29
    $region28: #{tpu_custom_call.1} parent=1 // pred_region
      _
    $region29: #{tpu_custom_call.1} parent=1 // pred_fallthru
      _
    %182 = vsyncpa [#allocation3], 1
    %183 = vsyncpa [#allocation4], 1

</llo_original>
